<compile_context>
chip_gen: v7x
topology: tpu7x:2x2x1
jax: 0.10.0
libtpu: 0.0.40
codegen_flags: <defaults>
</compile_context>

<pallas_src>
import jax
import jax.numpy as jnp
from jax.experimental import pallas as pl
from jax.experimental.pallas import tpu as pltpu


# ----------------------------------------------------------------------------
# Helpers
# ----------------------------------------------------------------------------
def _round_up(x, m):
    return ((x + m - 1) // m) * m


def _cdiv(a, b):
    return (a + b - 1) // b


def _mlp_epilogue(acc_f32, b1, w2, b2, null, m, out_dtype):
    """bias + SiLU + second linear + null-embedding blend (all math in f32)."""
    h = acc_f32 + b1
    h = h * jax.nn.sigmoid(h)                                   # SiLU, f32
    y = jnp.dot(h.astype(w2.dtype), w2,
                preferred_element_type=jnp.float32) + b2
    return (m * null + (1.0 - m) * y).astype(out_dtype)


# ----------------------------------------------------------------------------
# Pallas kernels
# ----------------------------------------------------------------------------
def _embedder_resident_kernel(x_ref, w1_ref, b1_ref, w2_ref, b2_ref,
                              null_ref, mask_ref, out_ref):
    """W1 fully VMEM-resident: one matmul + epilogue per batch tile."""
    acc = jnp.dot(x_ref[...].astype(w1_ref.dtype), w1_ref[...],
                  preferred_element_type=jnp.float32)
    out_ref[...] = _mlp_epilogue(acc, b1_ref[...], w2_ref[...], b2_ref[...],
                                 null_ref[...], mask_ref[...], out_ref.dtype)


def _embedder_streamed_kernel(x_ref, w1_ref, b1_ref, w2_ref, b2_ref,
                              null_ref, mask_ref, out_ref):
    """Fallback for very large D: stream (TK, H) tiles of W1, accumulate into
    the resident out_ref block (its index is constant across the k axis)."""
    k = pl.program_id(1)

    @pl.when(k == 0)
    def _init():
        out_ref[...] = jnp.zeros_like(out_ref)

    out_ref[...] += jnp.dot(x_ref[...].astype(w1_ref.dtype), w1_ref[...],
                            preferred_element_type=jnp.float32)

    @pl.when(k == pl.num_programs(1) - 1)
    def _finalize():
        out_ref[...] = _mlp_epilogue(out_ref[...], b1_ref[...], w2_ref[...],
                                     b2_ref[...], null_ref[...], mask_ref[...],
                                     out_ref.dtype)


# ----------------------------------------------------------------------------
# Wrapper
# ----------------------------------------------------------------------------
def image_latent_embedder_pallas(x, mask, params, *, batch_tile=None,
                                 k_tile=2048, matmul_dtype=jnp.bfloat16,
                                 resident_w1_bytes=8 * 1024 * 1024):
    """x: (N, D) flattened latents; mask: (N, 1) f32 drop mask (0/1)."""
    N, D = x.shape
    H = params["w1"].shape[1]

    w_item = jnp.dtype(matmul_dtype).itemsize
    x_item = jnp.dtype(x.dtype).itemsize

    # weights go to the matmul dtype once; x keeps its HBM dtype and is cast
    # tile-by-tile inside the kernel (no extra HBM pass over the big tensor).
    w1 = params["w1"].astype(matmul_dtype)                    # (D, H)
    w2 = params["w2"].astype(matmul_dtype)                    # (H, H)
    b1 = params["b1"].reshape(1, H).astype(jnp.float32)       # (1, H)
    b2 = params["b2"].reshape(1, H).astype(jnp.float32)       # (1, H)
    null = params["null_embedding"].reshape(1, H).astype(jnp.float32)
    mask = mask.astype(jnp.float32)

    # --- lane padding on the reduction axis (no-op when D % 128 == 0) --------
    Dp = _round_up(D, 128)

    # --- resident vs. streamed W1 --------------------------------------------
    resident = Dp * H * w_item <= resident_w1_bytes
    TK = Dp
    if not resident:
        tk0 = min(_round_up(max(k_tile, 128), 128), Dp)
        nk = _cdiv(Dp, tk0)
        TK = _round_up(_cdiv(Dp, nk), 128)
        Dp = nk * TK                                          # TK divides Dp

    if Dp != D:
        x = jnp.pad(x, ((0, 0), (0, Dp - D)))
        w1 = jnp.pad(w1, ((0, Dp - D), (0, 0)))

    # --- cheap sublane padding of batch (at most 7 extra rows) ---------------
    pN = _round_up(max(N, 8), 8)
    if pN != N:
        x = jnp.pad(x, ((0, pN - N), (0, 0)))
        mask = jnp.pad(mask, ((0, pN - N), (0, 0)))

    # --- batch tile: big enough to amortize per-step overhead & W1 re-reads,
    #     but >= 2 tiles when possible (v7x dual TensorCore), and VMEM-capped.
    vmem_budget = 40 * 1024 * 1024
    if resident:
        fixed = 2 * Dp * H * w_item + 2 * H * H * w_item + 8 * H * 4
        per_row = 2 * Dp * x_item + 2 * H * 4 + 8
    else:
        fixed = 2 * TK * H * w_item + 2 * H * H * w_item + 8 * H * 4
        per_row = 2 * TK * x_item + 2 * H * 4 + 8
    tb_cap = max(8, ((max(vmem_budget - fixed, 0) // per_row) // 8) * 8)

    if batch_tile is not None:
        TB = _round_up(max(batch_tile, 8), 8)
    elif pN <= 8:
        TB = pN
    else:
        TB = min(512, _round_up(_cdiv(pN, 2), 8))             # >= 2 batch tiles
    TB = min(max(TB, 8), tb_cap, pN)
    n_bt = _cdiv(pN, TB)

    # --- cost estimate (reflects actual W1 streaming pattern) ----------------
    w1_reads = 1 if resident else n_bt
    flops = 2 * pN * Dp * H + 2 * pN * H * H
    bytes_accessed = (x_item * pN * Dp                # x, once
                      + w_item * Dp * H * w1_reads    # W1
                      + w_item * H * H                # W2
                      + 4 * (3 * H + pN)              # biases, null, mask
                      + 4 * pN * H)                   # output
    cost = pl.CostEstimate(flops=int(flops), transcendentals=int(pN * H),
                           bytes_accessed=int(bytes_accessed))

    vmem_need = fixed + per_row * TB
    vmem_limit = int(min(48 * 1024 * 1024,
                         max(int(vmem_need * 1.5), 16 * 1024 * 1024)))

    # --- specs ----------------------------------------------------------------
    if resident:
        grid = (n_bt,)
        in_specs = [
            pl.BlockSpec((TB, Dp), lambda i: (i, 0)),     # x
            pl.BlockSpec((Dp, H), lambda i: (0, 0)),      # W1 (fetched once)
            pl.BlockSpec((1, H), lambda i: (0, 0)),       # b1
            pl.BlockSpec((H, H), lambda i: (0, 0)),       # W2
            pl.BlockSpec((1, H), lambda i: (0, 0)),       # b2
            pl.BlockSpec((1, H), lambda i: (0, 0)),       # null embedding
            pl.BlockSpec((TB, 1), lambda i: (i, 0)),      # mask
        ]
        out_specs = pl.BlockSpec((TB, H), lambda i: (i, 0))
        kernel = _embedder_resident_kernel
        dims = ("parallel",)
    else:
        grid = (n_bt, Dp // TK)
        in_specs = [
            pl.BlockSpec((TB, TK), lambda i, k: (i, k)),  # x
            pl.BlockSpec((TK, H), lambda i, k: (k, 0)),   # W1 (streamed)
            pl.BlockSpec((1, H), lambda i, k: (0, 0)),    # b1
            pl.BlockSpec((H, H), lambda i, k: (0, 0)),    # W2
            pl.BlockSpec((1, H), lambda i, k: (0, 0)),    # b2
            pl.BlockSpec((1, H), lambda i, k: (0, 0)),    # null embedding
            pl.BlockSpec((TB, 1), lambda i, k: (i, 0)),   # mask
        ]
        out_specs = pl.BlockSpec((TB, H), lambda i, k: (i, 0))
        kernel = _embedder_streamed_kernel
        dims = ("parallel", "arbitrary")

    out = pl.pallas_call(
        kernel,
        out_shape=jax.ShapeDtypeStruct((pN, H), jnp.float32),
        grid_spec=pltpu.PrefetchScalarGridSpec(
            num_scalar_prefetch=0,
            grid=grid,
            in_specs=in_specs,
            out_specs=out_specs,
        ),
        compiler_params=pltpu.CompilerParams(
            dimension_semantics=dims,
            vmem_limit_bytes=vmem_limit,
        ),
        cost_estimate=cost,
    )(x, w1, b1, w2, b2, null, mask)

    # rows >= N are padding / ragged-tile garbage; never read them.
    return out[:N]


def image_latent_embedder_forward(image_latent, params, *, dropout_prob,
                                  train=True, force_drop_mask=None,
                                  drop_key=None):
    """Mirrors ImageLatentEmbedder.forward (mask generation is cheap glue)."""
    # TODO(synk): torch.rand-based dropout mask is generated host-side with
    # jax.random rather than inside the Pallas kernel.
    N = image_latent.shape[0]
    x = image_latent.reshape(N, -1)
    if force_drop_mask is not None:
        mask = force_drop_mask.astype(jnp.float32)[:, None]
    elif train and dropout_prob > 0:
        mask = (jax.random.uniform(drop_key, (N,)) < dropout_prob)
        mask = mask.astype(jnp.float32)[:, None]
    else:
        mask = jnp.zeros((N, 1), jnp.float32)
    return image_latent_embedder_pallas(x, mask, params)


# ----------------------------------------------------------------------------
# Demo / smoke test
# ----------------------------------------------------------------------------
if __name__ == "__main__":
    B, C, SP = 2, 4, 16          # image latent: (B, C, SP, SP)
    HIDDEN = 128                 # hidden_size (lane-dense)
    D = C * SP * SP              # input_dim = 1024
    DROPOUT = 0.1

    key = jax.random.PRNGKey(0)
    k_x, k_w1, k_b1, k_w2, k_b2, k_null = jax.random.split(key, 6)

    params = {
        "w1": 0.02 * jax.random.normal(k_w1, (D, HIDDEN), jnp.float32),
        "b1": 0.01 * jax.random.normal(k_b1, (HIDDEN,), jnp.float32),
        "w2": 0.05 * jax.random.normal(k_w2, (HIDDEN, HIDDEN), jnp.float32),
        "b2": 0.01 * jax.random.normal(k_b2, (HIDDEN,), jnp.float32),
        "null_embedding": jax.random.normal(k_null, (HIDDEN,), jnp.float32),
    }

    image_latent = jax.random.normal(k_x, (B, C, SP, SP), jnp.float32)
    # deterministic classifier-free-guidance style drop: row 1 -> null embedding
    force_drop_mask = jnp.array([0, 1], dtype=jnp.int32)

    out = image_latent_embedder_forward(
        image_latent, params, dropout_prob=DROPOUT,
        train=True, force_drop_mask=force_drop_mask)
    out = jax.block_until_ready(out)

    # pure-JAX f32 reference
    x_flat = image_latent.reshape(B, -1)
    m = force_drop_mask.astype(jnp.float32)[:, None]
    h_ref = jnp.dot(x_flat, params["w1"],
                    precision=jax.lax.Precision.HIGHEST) + params["b1"]
    h_ref = h_ref * jax.nn.sigmoid(h_ref)
    y_ref = jnp.dot(h_ref, params["w2"],
                    precision=jax.lax.Precision.HIGHEST) + params["b2"]
    ref = m * params["null_embedding"] + (1.0 - m) * y_ref

    assert out.shape == (B, HIDDEN) and out.dtype == jnp.float32
    assert bool(jnp.all(jnp.isfinite(out)))
    # bf16 MXU operands with f32 accumulation -> slightly looser tolerance.
    assert bool(jnp.allclose(out, ref, atol=2e-2, rtol=2e-2))
    print("KERNEL_OK")
</pallas_src>

<mosaic_0001>
module attributes {stable_mosaic.version = 11 : i64} {
  func.func @_embedder_resident_kernel(%arg0: i32, %arg1: memref<8x1024xf32, #tpu.memory_space<vmem>>, %arg2: memref<1024x128xbf16, #tpu.memory_space<vmem>>, %arg3: memref<1x128xf32, #tpu.memory_space<vmem>>, %arg4: memref<128x128xbf16, #tpu.memory_space<vmem>>, %arg5: memref<1x128xf32, #tpu.memory_space<vmem>>, %arg6: memref<1x128xf32, #tpu.memory_space<vmem>>, %arg7: memref<8x1xf32, #tpu.memory_space<vmem>>, %arg8: memref<8x128xf32, #tpu.memory_space<vmem>>) attributes {dimension_semantics = [#tpu.dimension_semantics<parallel>], iteration_bounds = array<i64: 1>, scalar_prefetch = 0 : i64, scratch_operands = 0 : i64, tpu.core_type = #tpu.core_type<tc>, window_params = [{transform_indices = @transform_0, window_bounds = array<i64: 8, 1024>}, {pipeline_mode = #tpu.pipeline_mode<synchronous>, transform_indices = @transform_1, window_bounds = array<i64: 1024, 128>}, {pipeline_mode = #tpu.pipeline_mode<synchronous>, transform_indices = @transform_2, window_bounds = array<i64: 1, 128>}, {pipeline_mode = #tpu.pipeline_mode<synchronous>, transform_indices = @transform_3, window_bounds = array<i64: 128, 128>}, {pipeline_mode = #tpu.pipeline_mode<synchronous>, transform_indices = @transform_4, window_bounds = array<i64: 1, 128>}, {pipeline_mode = #tpu.pipeline_mode<synchronous>, transform_indices = @transform_5, window_bounds = array<i64: 1, 128>}, {transform_indices = @transform_6, window_bounds = array<i64: 8, 1>}, {transform_indices = @transform_7, window_bounds = array<i64: 8, 128>}]} {
    %c0 = arith.constant 0 : index
    %c0_0 = arith.constant 0 : index
    %0 = vector.load %arg1[%c0, %c0_0] : memref<8x1024xf32, #tpu.memory_space<vmem>>, vector<8x1024xf32>
    %1 = arith.truncf %0 : vector<8x1024xf32> to vector<8x1024xbf16>
    %c0_1 = arith.constant 0 : index
    %c0_2 = arith.constant 0 : index
    %2 = vector.load %arg2[%c0_1, %c0_2] : memref<1024x128xbf16, #tpu.memory_space<vmem>>, vector<1024x128xbf16>
    %cst = arith.constant dense<0.000000e+00> : vector<8x128xf32>
    %3 = tpu.matmul %1, %2, %cst {dimension_numbers = #tpu.dot_dimension_numbers<[1], [0], [0], [1], [0, 0, 1, 1], [], []>} : vector<8x1024xbf16>, vector<1024x128xbf16>, vector<8x128xf32> -> vector<8x128xf32>
    %c0_3 = arith.constant 0 : index
    %c0_4 = arith.constant 0 : index
    %4 = vector.load %arg3[%c0_3, %c0_4] : memref<1x128xf32, #tpu.memory_space<vmem>>, vector<1x128xf32>
    %c0_5 = arith.constant 0 : index
    %c0_6 = arith.constant 0 : index
    %5 = vector.load %arg4[%c0_5, %c0_6] : memref<128x128xbf16, #tpu.memory_space<vmem>>, vector<128x128xbf16>
    %c0_7 = arith.constant 0 : index
    %c0_8 = arith.constant 0 : index
    %6 = vector.load %arg5[%c0_7, %c0_8] : memref<1x128xf32, #tpu.memory_space<vmem>>, vector<1x128xf32>
    %c0_9 = arith.constant 0 : index
    %c0_10 = arith.constant 0 : index
    %7 = vector.load %arg6[%c0_9, %c0_10] : memref<1x128xf32, #tpu.memory_space<vmem>>, vector<1x128xf32>
    %c0_11 = arith.constant 0 : index
    %c0_12 = arith.constant 0 : index
    %8 = vector.load %arg7[%c0_11, %c0_12] : memref<8x1xf32, #tpu.memory_space<vmem>>, vector<8x1xf32>
    %9 = vector.broadcast %4 : vector<1x128xf32> to vector<8x128xf32>
    %10 = arith.addf %3, %9 : vector<8x128xf32>
    %11 = arith.negf %10 : vector<8x128xf32>
    %12 = math.exp %11 : vector<8x128xf32>
    %cst_13 = arith.constant 1.000000e+00 : f32
    %13 = vector.broadcast %cst_13 : f32 to vector<8x128xf32>
    %14 = arith.addf %13, %12 : vector<8x128xf32>
    %15 = arith.divf %13, %14 : vector<8x128xf32>
    %16 = arith.mulf %10, %15 : vector<8x128xf32>
    %17 = arith.truncf %16 : vector<8x128xf32> to vector<8x128xbf16>
    %cst_14 = arith.constant dense<0.000000e+00> : vector<8x128xf32>
    %18 = tpu.matmul %17, %5, %cst_14 {dimension_numbers = #tpu.dot_dimension_numbers<[1], [0], [0], [1], [0, 0, 1, 1], [], []>} : vector<8x128xbf16>, vector<128x128xbf16>, vector<8x128xf32> -> vector<8x128xf32>
    %19 = vector.broadcast %6 : vector<1x128xf32> to vector<8x128xf32>
    %20 = arith.addf %18, %19 : vector<8x128xf32>
    %21 = vector.broadcast %8 : vector<8x1xf32> to vector<8x128xf32>
    %22 = vector.broadcast %7 : vector<1x128xf32> to vector<8x128xf32>
    %23 = arith.mulf %21, %22 : vector<8x128xf32>
    %cst_15 = arith.constant 1.000000e+00 : f32
    %24 = vector.broadcast %cst_15 : f32 to vector<8x1xf32>
    %25 = arith.subf %24, %8 : vector<8x1xf32>
    %26 = vector.broadcast %25 : vector<8x1xf32> to vector<8x128xf32>
    %27 = arith.mulf %26, %20 : vector<8x128xf32>
    %28 = arith.addf %23, %27 : vector<8x128xf32>
    %c0_16 = arith.constant 0 : index
    %c0_17 = arith.constant 0 : index
    %29 = vector.load %arg8[%c0_16, %c0_17] : memref<8x128xf32, #tpu.memory_space<vmem>>, vector<8x128xf32>
    tpu.vector_store %arg8[%c0_16, %c0_17], %28 {strides = array<i32>} : memref<8x128xf32, #tpu.memory_space<vmem>>, vector<8x128xf32>,
    return
  }
  func.func @transform_0(%arg0: i32) -> (i32, i32) {
    %c0_i32 = arith.constant 0 : i32
    %c0_i32_0 = arith.constant 0 : i32
    return %arg0, %c0_i32 : i32, i32
  }
  func.func @transform_1(%arg0: i32) -> (i32, i32) {
    %c0_i32 = arith.constant 0 : i32
    %c0_i32_0 = arith.constant 0 : i32
    %c0_i32_1 = arith.constant 0 : i32
    return %c0_i32, %c0_i32_0 : i32, i32
  }
  func.func @transform_2(%arg0: i32) -> (i32, i32) {
    %c0_i32 = arith.constant 0 : i32
    %c0_i32_0 = arith.constant 0 : i32
    %c0_i32_1 = arith.constant 0 : i32
    return %c0_i32, %c0_i32_0 : i32, i32
  }
  func.func @transform_3(%arg0: i32) -> (i32, i32) {
    %c0_i32 = arith.constant 0 : i32
    %c0_i32_0 = arith.constant 0 : i32
    %c0_i32_1 = arith.constant 0 : i32
    return %c0_i32, %c0_i32_0 : i32, i32
  }
  func.func @transform_4(%arg0: i32) -> (i32, i32) {
    %c0_i32 = arith.constant 0 : i32
    %c0_i32_0 = arith.constant 0 : i32
    %c0_i32_1 = arith.constant 0 : i32
    return %c0_i32, %c0_i32_0 : i32, i32
  }
  func.func @transform_5(%arg0: i32) -> (i32, i32) {
    %c0_i32 = arith.constant 0 : i32
    %c0_i32_0 = arith.constant 0 : i32
    %c0_i32_1 = arith.constant 0 : i32
    return %c0_i32, %c0_i32_0 : i32, i32
  }
  func.func @transform_6(%arg0: i32) -> (i32, i32) {
    %c0_i32 = arith.constant 0 : i32
    %c0_i32_0 = arith.constant 0 : i32
    return %arg0, %c0_i32 : i32, i32
  }
  func.func @transform_7(%arg0: i32) -> (i32, i32) {
    %c0_i32 = arith.constant 0 : i32
    %c0_i32_0 = arith.constant 0 : i32
    return %arg0, %c0_i32 : i32, i32
  }
}

</mosaic_0001>

<llo_original>
// kernel: tpu_custom_call.1
$region0: #{tpu_custom_call.1}
  #allocation0 [shape = 'u32[]', space=smem, size = 0x4, offset = 0x4, fixed_abs, tag = 'smem constant byte address 0x4 - core index']
  #allocation1 [shape = 'u32[144,128]{1,0:T(1,128)}', space=vmem, size = 0x12000, scoped, tag = 'internal scratch']
  %s0 = inlined_call_operand.hbm [shape: f32[8,1024], index: 0, kind: input, shape index: {}]
  %s1 = inlined_call_operand.hbm [shape: bf16[1024,128], index: 1, kind: input, shape index: {}]
  %s2 = inlined_call_operand.vmem [shape: f32[1,128], index: 2, kind: input, shape index: {}]
  %s3 = inlined_call_operand.hbm [shape: bf16[128,128], index: 3, kind: input, shape index: {}]
  %s4 = inlined_call_operand.vmem [shape: f32[1,128], index: 4, kind: input, shape index: {}]
  %s5 = inlined_call_operand.vmem [shape: f32[1,128], index: 5, kind: input, shape index: {}]
  %s6 = inlined_call_operand.vmem [shape: f32[8,1], index: 6, kind: input, shape index: {}]
  %s7 = inlined_call_operand.hbm [shape: f32[8,128], index: 7, kind: output, shape index: {}]
  %s8 = sld [smem:[#allocation0]]
  $region50: #{tpu_custom_call.1} parent=0
    _
  %s10 = ssub.s32 1, %s8
  %s11 = scalar_select 0, %s10, %s8
  $region1: #{tpu_custom_call.1} parent=0
    #allocation2 [shape = 'u8[32768]{0}', space=vmem, size = 0x8000, scoped, tag = 'input window, operand 0, single buffered']
    #allocation3 [shape = 's32[1]{0}', space=sflag, size = 0x4, scoped, tag = 'scoped memory for tpu_custom_call.1']
    #allocation4 [shape = 's32[1]{0}', space=sflag, size = 0x4, scoped, tag = 'scoped memory for tpu_custom_call.1']
    #allocation5 [shape = 'u8[262144]{0}', space=vmem, size = 0x40000, scoped, tag = 'input window, operand 1, single buffered']
    #allocation6 [shape = 's32[1]{0}', space=sflag, size = 0x4, scoped, tag = 'scoped memory for tpu_custom_call.1']
    #allocation7 [shape = 'u8[32768]{0}', space=vmem, size = 0x8000, scoped, tag = 'input window, operand 3, single buffered']
    #allocation8 [shape = 'u8[4096]{0}', space=vmem, size = 0x1000, scoped, tag = 'output window, operand 0, single buffered']
    %12 = vsyncpa [#allocation3], 0
    %13 = vsyncpa [#allocation6], 0
    %14 = vsyncpa [#allocation4], 0
    // Predicated region
    $region2: #{tpu_custom_call.1} parent=1 // pred_check
      _
    $region3: #{tpu_custom_call.1} parent=1 // pred_check_branch
      %16 = sbr.rel (0) target = $region5
    $region4: #{tpu_custom_call.1} parent=1 // pred_region
      %s18 = ssub.s32 1024, 1024
      %19 = vsyncadd [#allocation3], %s18
      %s21 = sshll.u32 [#allocation2], 4
      %s22 = int_to_ptr.vmem [resolvable:$true] %s21
      %24 = dma.hbm_to_vmem [thread:$0]  %s0, 1024, %s22, [#allocation3]
    $region5: #{tpu_custom_call.1} parent=1 // pred_fallthru
      _
    // Predicated region
    $region6: #{tpu_custom_call.1} parent=1 // pred_check
      _
    $region7: #{tpu_custom_call.1} parent=1 // pred_check_branch
      %26 = sbr.rel (0) target = $region9
    $region8: #{tpu_custom_call.1} parent=1 // pred_region
      %s28 = ssub.s32 8192, 8192
      %29 = vsyncadd [#allocation6], %s28
      %s30 = sshll.u32 [#allocation5], 4
      %s31 = int_to_ptr.vmem [resolvable:$true] %s30
      %36 = dma.hbm_to_vmem [thread:$0]  %s1, 8192, %s31, [#allocation6], 64, 64, 4
    $region9: #{tpu_custom_call.1} parent=1 // pred_fallthru
      _
    // Predicated region
    $region10: #{tpu_custom_call.1} parent=1 // pred_check
      _
    $region11: #{tpu_custom_call.1} parent=1 // pred_check_branch
      %38 = sbr.rel (0) target = $region13
    $region12: #{tpu_custom_call.1} parent=1 // pred_region
      _
    $region13: #{tpu_custom_call.1} parent=1 // pred_fallthru
      _
    // Predicated region
    $region14: #{tpu_custom_call.1} parent=1 // pred_check
      _
    $region15: #{tpu_custom_call.1} parent=1 // pred_check_branch
      %40 = sbr.rel (0) target = $region17
    $region16: #{tpu_custom_call.1} parent=1 // pred_region
      %s42 = ssub.s32 1024, 1024
      %43 = vsyncadd [#allocation6], %s42
      %s44 = sshll.u32 [#allocation7], 4
      %s45 = int_to_ptr.vmem [resolvable:$true] %s44
      %50 = dma.hbm_to_vmem [thread:$0]  %s3, 1024, %s45, [#allocation6], 64, 64, 4
    $region17: #{tpu_custom_call.1} parent=1 // pred_fallthru
      _
    // Predicated region
    $region18: #{tpu_custom_call.1} parent=1 // pred_check
      _
    $region19: #{tpu_custom_call.1} parent=1 // pred_check_branch
      %52 = sbr.rel (0) target = $region21
    $region20: #{tpu_custom_call.1} parent=1 // pred_region
      _
    $region21: #{tpu_custom_call.1} parent=1 // pred_fallthru
      _
    // Predicated region
    $region22: #{tpu_custom_call.1} parent=1 // pred_check
      _
    $region23: #{tpu_custom_call.1} parent=1 // pred_check_branch
      %54 = sbr.rel (0) target = $region25
    $region24: #{tpu_custom_call.1} parent=1 // pred_region
      _
    $region25: #{tpu_custom_call.1} parent=1 // pred_fallthru
      _
    // Predicated region
    $region26: #{tpu_custom_call.1} parent=1 // pred_check
      _
    $region27: #{tpu_custom_call.1} parent=1 // pred_check_branch
      %56 = sbr.rel (0) target = $region29
    $region28: #{tpu_custom_call.1} parent=1 // pred_region
      _
    $region29: #{tpu_custom_call.1} parent=1 // pred_fallthru
      _
    // Predicated region
    $region30: #{tpu_custom_call.1} parent=1 // pred_check
      _
    $region31: #{tpu_custom_call.1} parent=1 // pred_check_branch
      %58 = sbr.rel (0) target = $region33
    $region32: #{tpu_custom_call.1} parent=1 // pred_region
      %59 = dma.done [#allocation3], 1024
    $region33: #{tpu_custom_call.1} parent=1 // pred_fallthru
      _
    // Predicated region
    $region34: #{tpu_custom_call.1} parent=1 // pred_check
      _
    $region35: #{tpu_custom_call.1} parent=1 // pred_check_branch
      %61 = sbr.rel (0) target = $region37
    $region36: #{tpu_custom_call.1} parent=1 // pred_region
      %62 = dma.done [#allocation6], 8192
    $region37: #{tpu_custom_call.1} parent=1 // pred_fallthru
      _
    // Predicated region
    $region38: #{tpu_custom_call.1} parent=1 // pred_check
      _
    $region39: #{tpu_custom_call.1} parent=1 // pred_check_branch
      %64 = sbr.rel (0) target = $region41
    $region40: #{tpu_custom_call.1} parent=1 // pred_region
      %65 = dma.done [#allocation6], 1024
    $region41: #{tpu_custom_call.1} parent=1 // pred_fallthru
      _
    %v67 = vld [vmem:[#allocation2] sm:$0xff]
    %v68 = vld [vmem:[#allocation2 + $0x8] sm:$0xff]
    %v69 = vld [vmem:[#allocation2 + $0x10] sm:$0xff]
    %v70 = vld [vmem:[#allocation2 + $0x18] sm:$0xff]
    %v71 = vld [vmem:[#allocation2 + $0x20] sm:$0xff]
    %v72 = vld [vmem:[#allocation2 + $0x28] sm:$0xff]
    %v73 = vld [vmem:[#allocation2 + $0x30] sm:$0xff]
    %v74 = vld [vmem:[#allocation2 + $0x38] sm:$0xff]
    %v75 = vpack.c.bf16 %v67, %v67
    %v76 = vpack.c.bf16 %v68, %v68
    %v77 = vpack.c.bf16 %v69, %v69
    %v78 = vpack.c.bf16 %v70, %v70
    %v79 = vpack.c.bf16 %v71, %v71
    %v80 = vpack.c.bf16 %v72, %v72
    %v81 = vpack.c.bf16 %v73, %v73
    %v82 = vpack.c.bf16 %v74, %v74
    %v83 = vld [vmem:[#allocation5] sm:$0xf]
    %v84 = vld [vmem:[#allocation5 + $0x4] sm:$0xf]
    %v85 = vld [vmem:[#allocation5 + $0x8] sm:$0xf]
    %v86 = vld [vmem:[#allocation5 + $0xc] sm:$0xf]
    %v87 = vld [vmem:[#allocation5 + $0x10] sm:$0xf]
    %v88 = vld [vmem:[#allocation5 + $0x14] sm:$0xf]
    %v89 = vld [vmem:[#allocation5 + $0x18] sm:$0xf]
    %v90 = vld [vmem:[#allocation5 + $0x1c] sm:$0xf]
    %v91 = vld [vmem:[#allocation5 + $0x20] sm:$0xf]
    %v92 = vld [vmem:[#allocation5 + $0x24] sm:$0xf]
    %v93 = vld [vmem:[#allocation5 + $0x28] sm:$0xf]
    %v94 = vld [vmem:[#allocation5 + $0x2c] sm:$0xf]
    %v95 = vld [vmem:[#allocation5 + $0x30] sm:$0xf]
    %v96 = vld [vmem:[#allocation5 + $0x34] sm:$0xf]
    %v97 = vld [vmem:[#allocation5 + $0x38] sm:$0xf]
    %v98 = vld [vmem:[#allocation5 + $0x3c] sm:$0xf]
    %v99 = vld [vmem:[#allocation5 + $0x40] sm:$0xf]
    %v100 = vld [vmem:[#allocation5 + $0x44] sm:$0xf]
    %v101 = vld [vmem:[#allocation5 + $0x48] sm:$0xf]
    %v102 = vld [vmem:[#allocation5 + $0x4c] sm:$0xf]
    %v103 = vld [vmem:[#allocation5 + $0x50] sm:$0xf]
    %v104 = vld [vmem:[#allocation5 + $0x54] sm:$0xf]
    %v105 = vld [vmem:[#allocation5 + $0x58] sm:$0xf]
    %v106 = vld [vmem:[#allocation5 + $0x5c] sm:$0xf]
    %v107 = vld [vmem:[#allocation5 + $0x60] sm:$0xf]
    %v108 = vld [vmem:[#allocation5 + $0x64] sm:$0xf]
    %v109 = vld [vmem:[#allocation5 + $0x68] sm:$0xf]
    %v110 = vld [vmem:[#allocation5 + $0x6c] sm:$0xf]
    %v111 = vld [vmem:[#allocation5 + $0x70] sm:$0xf]
    %v112 = vld [vmem:[#allocation5 + $0x74] sm:$0xf]
    %v113 = vld [vmem:[#allocation5 + $0x78] sm:$0xf]
    %v114 = vld [vmem:[#allocation5 + $0x7c] sm:$0xf]
    %v115 = vld [vmem:[#allocation5 + $0x80] sm:$0xf]
    %v116 = vld [vmem:[#allocation5 + $0x84] sm:$0xf]
    %v117 = vld [vmem:[#allocation5 + $0x88] sm:$0xf]
    %v118 = vld [vmem:[#allocation5 + $0x8c] sm:$0xf]
    %v119 = vld [vmem:[#allocation5 + $0x90] sm:$0xf]
    %v120 = vld [vmem:[#allocation5 + $0x94] sm:$0xf]
    %v121 = vld [vmem:[#allocation5 + $0x98] sm:$0xf]
    %v122 = vld [vmem:[#allocation5 + $0x9c] sm:$0xf]
    %v123 = vld [vmem:[#allocation5 + $0xa0] sm:$0xf]
    %v124 = vld [vmem:[#allocation5 + $0xa4] sm:$0xf]
    %v125 = vld [vmem:[#allocation5 + $0xa8] sm:$0xf]
    %v126 = vld [vmem:[#allocation5 + $0xac] sm:$0xf]
    %v127 = vld [vmem:[#allocation5 + $0xb0] sm:$0xf]
    %v128 = vld [vmem:[#allocation5 + $0xb4] sm:$0xf]
    %v129 = vld [vmem:[#allocation5 + $0xb8] sm:$0xf]
    %v130 = vld [vmem:[#allocation5 + $0xbc] sm:$0xf]
    %v131 = vld [vmem:[#allocation5 + $0xc0] sm:$0xf]
    %v132 = vld [vmem:[#allocation5 + $0xc4] sm:$0xf]
    %v133 = vld [vmem:[#allocation5 + $0xc8] sm:$0xf]
    %v134 = vld [vmem:[#allocation5 + $0xcc] sm:$0xf]
    %v135 = vld [vmem:[#allocation5 + $0xd0] sm:$0xf]
    %v136 = vld [vmem:[#allocation5 + $0xd4] sm:$0xf]
    %v137 = vld [vmem:[#allocation5 + $0xd8] sm:$0xf]
    %v138 = vld [vmem:[#allocation5 + $0xdc] sm:$0xf]
    %v139 = vld [vmem:[#allocation5 + $0xe0] sm:$0xf]
    %v140 = vld [vmem:[#allocation5 + $0xe4] sm:$0xf]
    %v141 = vld [vmem:[#allocation5 + $0xe8] sm:$0xf]
    %v142 = vld [vmem:[#allocation5 + $0xec] sm:$0xf]
    %v143 = vld [vmem:[#allocation5 + $0xf0] sm:$0xf]
    %v144 = vld [vmem:[#allocation5 + $0xf4] sm:$0xf]
    %v145 = vld [vmem:[#allocation5 + $0xf8] sm:$0xf]
    %v146 = vld [vmem:[#allocation5 + $0xfc] sm:$0xf]
    %v147 = vld [vmem:[#allocation5 + $0x100] sm:$0xf]
    %v148 = vld [vmem:[#allocation5 + $0x104] sm:$0xf]
    %v149 = vld [vmem:[#allocation5 + $0x108] sm:$0xf]
    %v150 = vld [vmem:[#allocation5 + $0x10c] sm:$0xf]
    %v151 = vld [vmem:[#allocation5 + $0x110] sm:$0xf]
    %v152 = vld [vmem:[#allocation5 + $0x114] sm:$0xf]
    %v153 = vld [vmem:[#allocation5 + $0x118] sm:$0xf]
    %v154 = vld [vmem:[#allocation5 + $0x11c] sm:$0xf]
    %v155 = vld [vmem:[#allocation5 + $0x120] sm:$0xf]
    %v156 = vld [vmem:[#allocation5 + $0x124] sm:$0xf]
    %v157 = vld [vmem:[#allocation5 + $0x128] sm:$0xf]
    %v158 = vld [vmem:[#allocation5 + $0x12c] sm:$0xf]
    %v159 = vld [vmem:[#allocation5 + $0x130] sm:$0xf]
    %v160 = vld [vmem:[#allocation5 + $0x134] sm:$0xf]
    %v161 = vld [vmem:[#allocation5 + $0x138] sm:$0xf]
    %v162 = vld [vmem:[#allocation5 + $0x13c] sm:$0xf]
    %v163 = vld [vmem:[#allocation5 + $0x140] sm:$0xf]
    %v164 = vld [vmem:[#allocation5 + $0x144] sm:$0xf]
    %v165 = vld [vmem:[#allocation5 + $0x148] sm:$0xf]
    %v166 = vld [vmem:[#allocation5 + $0x14c] sm:$0xf]
    %v167 = vld [vmem:[#allocation5 + $0x150] sm:$0xf]
    %v168 = vld [vmem:[#allocation5 + $0x154] sm:$0xf]
    %v169 = vld [vmem:[#allocation5 + $0x158] sm:$0xf]
    %v170 = vld [vmem:[#allocation5 + $0x15c] sm:$0xf]
    %v171 = vld [vmem:[#allocation5 + $0x160] sm:$0xf]
    %v172 = vld [vmem:[#allocation5 + $0x164] sm:$0xf]
    %v173 = vld [vmem:[#allocation5 + $0x168] sm:$0xf]
    %v174 = vld [vmem:[#allocation5 + $0x16c] sm:$0xf]
    %v175 = vld [vmem:[#allocation5 + $0x170] sm:$0xf]
    %v176 = vld [vmem:[#allocation5 + $0x174] sm:$0xf]
    %v177 = vld [vmem:[#allocation5 + $0x178] sm:$0xf]
    %v178 = vld [vmem:[#allocation5 + $0x17c] sm:$0xf]
    %v179 = vld [vmem:[#allocation5 + $0x180] sm:$0xf]
    %v180 = vld [vmem:[#allocation5 + $0x184] sm:$0xf]
    %v181 = vld [vmem:[#allocation5 + $0x188] sm:$0xf]
    %v182 = vld [vmem:[#allocation5 + $0x18c] sm:$0xf]
    %v183 = vld [vmem:[#allocation5 + $0x190] sm:$0xf]
    %v184 = vld [vmem:[#allocation5 + $0x194] sm:$0xf]
    %v185 = vld [vmem:[#allocation5 + $0x198] sm:$0xf]
    %v186 = vld [vmem:[#allocation5 + $0x19c] sm:$0xf]
    %v187 = vld [vmem:[#allocation5 + $0x1a0] sm:$0xf]
    %v188 = vld [vmem:[#allocation5 + $0x1a4] sm:$0xf]
    %v189 = vld [vmem:[#allocation5 + $0x1a8] sm:$0xf]
    %v190 = vld [vmem:[#allocation5 + $0x1ac] sm:$0xf]
    %v191 = vld [vmem:[#allocation5 + $0x1b0] sm:$0xf]
    %v192 = vld [vmem:[#allocation5 + $0x1b4] sm:$0xf]
    %v193 = vld [vmem:[#allocation5 + $0x1b8] sm:$0xf]
    %v194 = vld [vmem:[#allocation5 + $0x1bc] sm:$0xf]
    %v195 = vld [vmem:[#allocation5 + $0x1c0] sm:$0xf]
    %v196 = vld [vmem:[#allocation5 + $0x1c4] sm:$0xf]
    %v197 = vld [vmem:[#allocation5 + $0x1c8] sm:$0xf]
    %v198 = vld [vmem:[#allocation5 + $0x1cc] sm:$0xf]
    %v199 = vld [vmem:[#allocation5 + $0x1d0] sm:$0xf]
    %v200 = vld [vmem:[#allocation5 + $0x1d4] sm:$0xf]
    %v201 = vld [vmem:[#allocation5 + $0x1d8] sm:$0xf]
    %v202 = vld [vmem:[#allocation5 + $0x1dc] sm:$0xf]
    %v203 = vld [vmem:[#allocation5 + $0x1e0] sm:$0xf]
    %v204 = vld [vmem:[#allocation5 + $0x1e4] sm:$0xf]
    %v205 = vld [vmem:[#allocation5 + $0x1e8] sm:$0xf]
    %v206 = vld [vmem:[#allocation5 + $0x1ec] sm:$0xf]
    %v207 = vld [vmem:[#allocation5 + $0x1f0] sm:$0xf]
    %v208 = vld [vmem:[#allocation5 + $0x1f4] sm:$0xf]
    %v209 = vld [vmem:[#allocation5 + $0x1f8] sm:$0xf]
    %v210 = vld [vmem:[#allocation5 + $0x1fc] sm:$0xf]
    %v211 = vld [vmem:[%s2] sm:$0x1]
    %v212 = vld [vmem:[#allocation7] sm:$0xf]
    %v213 = vld [vmem:[#allocation7 + $0x4] sm:$0xf]
    %v214 = vld [vmem:[#allocation7 + $0x8] sm:$0xf]
    %v215 = vld [vmem:[#allocation7 + $0xc] sm:$0xf]
    %v216 = vld [vmem:[#allocation7 + $0x10] sm:$0xf]
    %v217 = vld [vmem:[#allocation7 + $0x14] sm:$0xf]
    %v218 = vld [vmem:[#allocation7 + $0x18] sm:$0xf]
    %v219 = vld [vmem:[#allocation7 + $0x1c] sm:$0xf]
    %v220 = vld [vmem:[#allocation7 + $0x20] sm:$0xf]
    %v221 = vld [vmem:[#allocation7 + $0x24] sm:$0xf]
    %v222 = vld [vmem:[#allocation7 + $0x28] sm:$0xf]
    %v223 = vld [vmem:[#allocation7 + $0x2c] sm:$0xf]
    %v224 = vld [vmem:[#allocation7 + $0x30] sm:$0xf]
    %v225 = vld [vmem:[#allocation7 + $0x34] sm:$0xf]
    %v226 = vld [vmem:[#allocation7 + $0x38] sm:$0xf]
    %v227 = vld [vmem:[#allocation7 + $0x3c] sm:$0xf]
    %v228 = vld [vmem:[%s4] sm:$0x1]
    %v229 = vld [vmem:[%s5] sm:$0x1]
    %v230 = vld [vmem:[%s6] sm:$0xff]
    %v232 = vlaneseq
    %v233 = vshrl.u32 %v232, 7
    %v234 = vsub.s32 0, %v233
    %v235 = vrot.slane %v211, %v234
    %v365 = vunpack.c.l.b16 %v83
    %v366 = vunpack.c.l.b16 %v84
    %v367 = vunpack.c.l.b16 %v85
    %v368 = vunpack.c.l.b16 %v86
    %v369 = vunpack.c.l.b16 %v87
    %v370 = vunpack.c.l.b16 %v88
    %v371 = vunpack.c.l.b16 %v89
    %v372 = vunpack.c.l.b16 %v90
    %v373 = vunpack.c.l.b16 %v91
    %v374 = vunpack.c.l.b16 %v92
    %v375 = vunpack.c.l.b16 %v93
    %v376 = vunpack.c.l.b16 %v94
    %v377 = vunpack.c.l.b16 %v95
    %v378 = vunpack.c.l.b16 %v96
    %v379 = vunpack.c.l.b16 %v97
    %v380 = vunpack.c.l.b16 %v98
    %v381 = vunpack.c.l.b16 %v99
    %v382 = vunpack.c.l.b16 %v100
    %v383 = vunpack.c.l.b16 %v101
    %v384 = vunpack.c.l.b16 %v102
    %v385 = vunpack.c.l.b16 %v103
    %v386 = vunpack.c.l.b16 %v104
    %v387 = vunpack.c.l.b16 %v105
    %v388 = vunpack.c.l.b16 %v106
    %v389 = vunpack.c.l.b16 %v107
    %v390 = vunpack.c.l.b16 %v108
    %v391 = vunpack.c.l.b16 %v109
    %v392 = vunpack.c.l.b16 %v110
    %v393 = vunpack.c.l.b16 %v111
    %v394 = vunpack.c.l.b16 %v112
    %v395 = vunpack.c.l.b16 %v113
    %v396 = vunpack.c.l.b16 %v114
    %v397 = vunpack.c.l.b16 %v115
    %v398 = vunpack.c.l.b16 %v116
    %v399 = vunpack.c.l.b16 %v117
    %v400 = vunpack.c.l.b16 %v118
    %v401 = vunpack.c.l.b16 %v119
    %v402 = vunpack.c.l.b16 %v120
    %v403 = vunpack.c.l.b16 %v121
    %v404 = vunpack.c.l.b16 %v122
    %v405 = vunpack.c.l.b16 %v123
    %v406 = vunpack.c.l.b16 %v124
    %v407 = vunpack.c.l.b16 %v125
    %v408 = vunpack.c.l.b16 %v126
    %v409 = vunpack.c.l.b16 %v127
    %v410 = vunpack.c.l.b16 %v128
    %v411 = vunpack.c.l.b16 %v129
    %v412 = vunpack.c.l.b16 %v130
    %v413 = vunpack.c.l.b16 %v131
    %v414 = vunpack.c.l.b16 %v132
    %v415 = vunpack.c.l.b16 %v133
    %v416 = vunpack.c.l.b16 %v134
    %v417 = vunpack.c.l.b16 %v135
    %v418 = vunpack.c.l.b16 %v136
    %v419 = vunpack.c.l.b16 %v137
    %v420 = vunpack.c.l.b16 %v138
    %v421 = vunpack.c.l.b16 %v139
    %v422 = vunpack.c.l.b16 %v140
    %v423 = vunpack.c.l.b16 %v141
    %v424 = vunpack.c.l.b16 %v142
    %v425 = vunpack.c.l.b16 %v143
    %v426 = vunpack.c.l.b16 %v144
    %v427 = vunpack.c.l.b16 %v145
    %v428 = vunpack.c.l.b16 %v146
    %v429 = vunpack.c.l.b16 %v147
    %v430 = vunpack.c.l.b16 %v148
    %v431 = vunpack.c.l.b16 %v149
    %v432 = vunpack.c.l.b16 %v150
    %v433 = vunpack.c.l.b16 %v151
    %v434 = vunpack.c.l.b16 %v152
    %v435 = vunpack.c.l.b16 %v153
    %v436 = vunpack.c.l.b16 %v154
    %v437 = vunpack.c.l.b16 %v155
    %v438 = vunpack.c.l.b16 %v156
    %v439 = vunpack.c.l.b16 %v157
    %v440 = vunpack.c.l.b16 %v158
    %v441 = vunpack.c.l.b16 %v159
    %v442 = vunpack.c.l.b16 %v160
    %v443 = vunpack.c.l.b16 %v161
    %v444 = vunpack.c.l.b16 %v162
    %v445 = vunpack.c.l.b16 %v163
    %v446 = vunpack.c.l.b16 %v164
    %v447 = vunpack.c.l.b16 %v165
    %v448 = vunpack.c.l.b16 %v166
    %v449 = vunpack.c.l.b16 %v167
    %v450 = vunpack.c.l.b16 %v168
    %v451 = vunpack.c.l.b16 %v169
    %v452 = vunpack.c.l.b16 %v170
    %v453 = vunpack.c.l.b16 %v171
    %v454 = vunpack.c.l.b16 %v172
    %v455 = vunpack.c.l.b16 %v173
    %v456 = vunpack.c.l.b16 %v174
    %v457 = vunpack.c.l.b16 %v175
    %v458 = vunpack.c.l.b16 %v176
    %v459 = vunpack.c.l.b16 %v177
    %v460 = vunpack.c.l.b16 %v178
    %v461 = vunpack.c.l.b16 %v179
    %v462 = vunpack.c.l.b16 %v180
    %v463 = vunpack.c.l.b16 %v181
    %v464 = vunpack.c.l.b16 %v182
    %v465 = vunpack.c.l.b16 %v183
    %v466 = vunpack.c.l.b16 %v184
    %v467 = vunpack.c.l.b16 %v185
    %v468 = vunpack.c.l.b16 %v186
    %v469 = vunpack.c.l.b16 %v187
    %v470 = vunpack.c.l.b16 %v188
    %v471 = vunpack.c.l.b16 %v189
    %v472 = vunpack.c.l.b16 %v190
    %v473 = vunpack.c.l.b16 %v191
    %v474 = vunpack.c.l.b16 %v192
    %v475 = vunpack.c.l.b16 %v193
    %v476 = vunpack.c.l.b16 %v194
    %v477 = vunpack.c.l.b16 %v195
    %v478 = vunpack.c.l.b16 %v196
    %v479 = vunpack.c.l.b16 %v197
    %v480 = vunpack.c.l.b16 %v198
    %v481 = vunpack.c.l.b16 %v199
    %v482 = vunpack.c.l.b16 %v200
    %v483 = vunpack.c.l.b16 %v201
    %v484 = vunpack.c.l.b16 %v202
    %v485 = vunpack.c.l.b16 %v203
    %v486 = vunpack.c.l.b16 %v204
    %v487 = vunpack.c.l.b16 %v205
    %v488 = vunpack.c.l.b16 %v206
    %v489 = vunpack.c.l.b16 %v207
    %v490 = vunpack.c.l.b16 %v208
    %v491 = vunpack.c.l.b16 %v209
    %v492 = vunpack.c.l.b16 %v210
    %v493 = vpack.c.b16 %v366, %v365
    %v494 = vpack.c.b16 %v368, %v367
    %v495 = vpack.c.b16 %v370, %v369
    %v496 = vpack.c.b16 %v372, %v371
    %v497 = vpack.c.b16 %v374, %v373
    %v498 = vpack.c.b16 %v376, %v375
    %v499 = vpack.c.b16 %v378, %v377
    %v500 = vpack.c.b16 %v380, %v379
    %v501 = vpack.c.b16 %v382, %v381
    %v502 = vpack.c.b16 %v384, %v383
    %v503 = vpack.c.b16 %v386, %v385
    %v504 = vpack.c.b16 %v388, %v387
    %v505 = vpack.c.b16 %v390, %v389
    %v506 = vpack.c.b16 %v392, %v391
    %v507 = vpack.c.b16 %v394, %v393
    %v508 = vpack.c.b16 %v396, %v395
    %v509 = vpack.c.b16 %v398, %v397
    %v510 = vpack.c.b16 %v400, %v399
    %v511 = vpack.c.b16 %v402, %v401
    %v512 = vpack.c.b16 %v404, %v403
    %v513 = vpack.c.b16 %v406, %v405
    %v514 = vpack.c.b16 %v408, %v407
    %v515 = vpack.c.b16 %v410, %v409
    %v516 = vpack.c.b16 %v412, %v411
    %v517 = vpack.c.b16 %v414, %v413
    %v518 = vpack.c.b16 %v416, %v415
    %v519 = vpack.c.b16 %v418, %v417
    %v520 = vpack.c.b16 %v420, %v419
    %v521 = vpack.c.b16 %v422, %v421
    %v522 = vpack.c.b16 %v424, %v423
    %v523 = vpack.c.b16 %v426, %v425
    %v524 = vpack.c.b16 %v428, %v427
    %v525 = vpack.c.b16 %v430, %v429
    %v526 = vpack.c.b16 %v432, %v431
    %v527 = vpack.c.b16 %v434, %v433
    %v528 = vpack.c.b16 %v436, %v435
    %v529 = vpack.c.b16 %v438, %v437
    %v530 = vpack.c.b16 %v440, %v439
    %v531 = vpack.c.b16 %v442, %v441
    %v532 = vpack.c.b16 %v444, %v443
    %v533 = vpack.c.b16 %v446, %v445
    %v534 = vpack.c.b16 %v448, %v447
    %v535 = vpack.c.b16 %v450, %v449
    %v536 = vpack.c.b16 %v452, %v451
    %v537 = vpack.c.b16 %v454, %v453
    %v538 = vpack.c.b16 %v456, %v455
    %v539 = vpack.c.b16 %v458, %v457
    %v540 = vpack.c.b16 %v460, %v459
    %v541 = vpack.c.b16 %v462, %v461
    %v542 = vpack.c.b16 %v464, %v463
    %v543 = vpack.c.b16 %v466, %v465
    %v544 = vpack.c.b16 %v468, %v467
    %v545 = vpack.c.b16 %v470, %v469
    %v546 = vpack.c.b16 %v472, %v471
    %v547 = vpack.c.b16 %v474, %v473
    %v548 = vpack.c.b16 %v476, %v475
    %v549 = vpack.c.b16 %v478, %v477
    %v550 = vpack.c.b16 %v480, %v479
    %v551 = vpack.c.b16 %v482, %v481
    %v552 = vpack.c.b16 %v484, %v483
    %v553 = vpack.c.b16 %v486, %v485
    %v554 = vpack.c.b16 %v488, %v487
    %v555 = vpack.c.b16 %v490, %v489
    %v556 = vpack.c.b16 %v492, %v491
    %621 = vmatprep.subr.bf16.mxu0 0
    %622 = vmatpush1.bf16.msra.mxu0 %v493
    %623 = vmatprep.subr.bf16.mxu0 0
    %624 = vmatpush1.bf16.msra.mxu0 %v494
    %625 = vmatprep.subr.bf16.mxu0 0
    %626 = vmatpush1.bf16.msra.mxu0 %v495
    %627 = vmatprep.subr.bf16.mxu0 0
    %628 = vmatpush1.bf16.msra.mxu0 %v496
    %629 = vmatprep.subr.bf16.mxu0 0
    %630 = vmatpush1.bf16.msra.mxu0 %v497
    %631 = vmatprep.subr.bf16.mxu0 0
    %632 = vmatpush1.bf16.msra.mxu0 %v498
    %633 = vmatprep.subr.bf16.mxu0 0
    %634 = vmatpush1.bf16.msra.mxu0 %v499
    %635 = vmatprep.subr.bf16.mxu0 0
    %636 = vmatpush1.bf16.msra.mxu0 %v500
    %637 = vmatprep.subr.bf16.mxu0 0
    %638 = vmatpush1.bf16.msra.mxu0 %v501
    %639 = vmatprep.subr.bf16.mxu0 0
    %640 = vmatpush1.bf16.msra.mxu0 %v502
    %641 = vmatprep.subr.bf16.mxu0 0
    %642 = vmatpush1.bf16.msra.mxu0 %v503
    %643 = vmatprep.subr.bf16.mxu0 0
    %644 = vmatpush1.bf16.msra.mxu0 %v504
    %645 = vmatprep.subr.bf16.mxu0 0
    %646 = vmatpush1.bf16.msra.mxu0 %v505
    %647 = vmatprep.subr.bf16.mxu0 0
    %648 = vmatpush1.bf16.msra.mxu0 %v506
    %649 = vmatprep.subr.bf16.mxu0 0
    %650 = vmatpush1.bf16.msra.mxu0 %v507
    %651 = vmatprep.subr.bf16.mxu0 0
    %652 = vmatpush1.bf16.msra.mxu0 %v508
    %653 = vmatprep.mubr.bf16.mxu0 %v76
    %654 = vmatmul.mubr.bf16.gmra.mrb[0].mxu0 %v75
    %v655 = vpop.f32.mrb[0].mxu0
    %v656 = vadd.f32 %v235, %v655
    %v657 = vpop.f32.mrb[0].mxu0
    %v658 = vpop.f32.mrb[0].mxu0
    %v659 = vpop.f32.mrb[0].mxu0
    %660 = vdwg.mxu0
    %661 = vmatprep.subr.bf16.mxu0 0
    %662 = vmatpush1.bf16.msra.mxu0 %v509
    %663 = vmatprep.subr.bf16.mxu0 0
    %664 = vmatpush1.bf16.msra.mxu0 %v510
    %665 = vmatprep.subr.bf16.mxu0 0
    %666 = vmatpush1.bf16.msra.mxu0 %v511
    %667 = vmatprep.subr.bf16.mxu0 0
    %668 = vmatpush1.bf16.msra.mxu0 %v512
    %669 = vmatprep.subr.bf16.mxu0 0
    %670 = vmatpush1.bf16.msra.mxu0 %v513
    %671 = vmatprep.subr.bf16.mxu0 0
    %672 = vmatpush1.bf16.msra.mxu0 %v514
    %673 = vmatprep.subr.bf16.mxu0 0
    %674 = vmatpush1.bf16.msra.mxu0 %v515
    %675 = vmatprep.subr.bf16.mxu0 0
    %676 = vmatpush1.bf16.msra.mxu0 %v516
    %677 = vmatprep.subr.bf16.mxu0 0
    %678 = vmatpush1.bf16.msra.mxu0 %v517
    %679 = vmatprep.subr.bf16.mxu0 0
    %680 = vmatpush1.bf16.msra.mxu0 %v518
    %681 = vmatprep.subr.bf16.mxu0 0
    %682 = vmatpush1.bf16.msra.mxu0 %v519
    %683 = vmatprep.subr.bf16.mxu0 0
    %684 = vmatpush1.bf16.msra.mxu0 %v520
    %685 = vmatprep.subr.bf16.mxu0 0
    %686 = vmatpush1.bf16.msra.mxu0 %v521
    %687 = vmatprep.subr.bf16.mxu0 0
    %688 = vmatpush1.bf16.msra.mxu0 %v522
    %689 = vmatprep.subr.bf16.mxu0 0
    %690 = vmatpush1.bf16.msra.mxu0 %v523
    %691 = vmatprep.subr.bf16.mxu0 0
    %692 = vmatpush1.bf16.msra.mxu0 %v524
    %693 = vmatprep.mubr.bf16.mxu0 %v78
    %694 = vmatmul.mubr.bf16.gmra.mrb[0].mxu0 %v77
    %v695 = vpop.f32.mrb[0].mxu0
    %v696 = vadd.f32 %v656, %v695
    %v697 = vpop.f32.mrb[0].mxu0
    %v698 = vpop.f32.mrb[0].mxu0
    %v699 = vpop.f32.mrb[0].mxu0
    %700 = vdwg.mxu0
    %701 = vmatprep.subr.bf16.mxu0 0
    %702 = vmatpush1.bf16.msra.mxu0 %v525
    %703 = vmatprep.subr.bf16.mxu0 0
    %704 = vmatpush1.bf16.msra.mxu0 %v526
    %705 = vmatprep.subr.bf16.mxu0 0
    %706 = vmatpush1.bf16.msra.mxu0 %v527
    %707 = vmatprep.subr.bf16.mxu0 0
    %708 = vmatpush1.bf16.msra.mxu0 %v528
    %709 = vmatprep.subr.bf16.mxu0 0
    %710 = vmatpush1.bf16.msra.mxu0 %v529
    %711 = vmatprep.subr.bf16.mxu0 0
    %712 = vmatpush1.bf16.msra.mxu0 %v530
    %713 = vmatprep.subr.bf16.mxu0 0
    %714 = vmatpush1.bf16.msra.mxu0 %v531
    %715 = vmatprep.subr.bf16.mxu0 0
    %716 = vmatpush1.bf16.msra.mxu0 %v532
    %717 = vmatprep.subr.bf16.mxu0 0
    %718 = vmatpush1.bf16.msra.mxu0 %v533
    %719 = vmatprep.subr.bf16.mxu0 0
    %720 = vmatpush1.bf16.msra.mxu0 %v534
    %721 = vmatprep.subr.bf16.mxu0 0
    %722 = vmatpush1.bf16.msra.mxu0 %v535
    %723 = vmatprep.subr.bf16.mxu0 0
    %724 = vmatpush1.bf16.msra.mxu0 %v536
    %725 = vmatprep.subr.bf16.mxu0 0
    %726 = vmatpush1.bf16.msra.mxu0 %v537
    %727 = vmatprep.subr.bf16.mxu0 0
    %728 = vmatpush1.bf16.msra.mxu0 %v538
    %729 = vmatprep.subr.bf16.mxu0 0
    %730 = vmatpush1.bf16.msra.mxu0 %v539
    %731 = vmatprep.subr.bf16.mxu0 0
    %732 = vmatpush1.bf16.msra.mxu0 %v540
    %733 = vmatprep.mubr.bf16.mxu0 %v80
    %734 = vmatmul.mubr.bf16.gmra.mrb[0].mxu0 %v79
    %v735 = vpop.f32.mrb[0].mxu0
    %v736 = vadd.f32 %v696, %v735
    %v737 = vpop.f32.mrb[0].mxu0
    %v738 = vpop.f32.mrb[0].mxu0
    %v739 = vpop.f32.mrb[0].mxu0
    %740 = vdwg.mxu0
    %741 = vmatprep.subr.bf16.mxu0 0
    %742 = vmatpush1.bf16.msra.mxu0 %v541
    %743 = vmatprep.subr.bf16.mxu0 0
    %744 = vmatpush1.bf16.msra.mxu0 %v542
    %745 = vmatprep.subr.bf16.mxu0 0
    %746 = vmatpush1.bf16.msra.mxu0 %v543
    %747 = vmatprep.subr.bf16.mxu0 0
    %748 = vmatpush1.bf16.msra.mxu0 %v544
    %749 = vmatprep.subr.bf16.mxu0 0
    %750 = vmatpush1.bf16.msra.mxu0 %v545
    %751 = vmatprep.subr.bf16.mxu0 0
    %752 = vmatpush1.bf16.msra.mxu0 %v546
    %753 = vmatprep.subr.bf16.mxu0 0
    %754 = vmatpush1.bf16.msra.mxu0 %v547
    %755 = vmatprep.subr.bf16.mxu0 0
    %756 = vmatpush1.bf16.msra.mxu0 %v548
    %757 = vmatprep.subr.bf16.mxu0 0
    %758 = vmatpush1.bf16.msra.mxu0 %v549
    %759 = vmatprep.subr.bf16.mxu0 0
    %760 = vmatpush1.bf16.msra.mxu0 %v550
    %761 = vmatprep.subr.bf16.mxu0 0
    %762 = vmatpush1.bf16.msra.mxu0 %v551
    %763 = vmatprep.subr.bf16.mxu0 0
    %764 = vmatpush1.bf16.msra.mxu0 %v552
    %765 = vmatprep.subr.bf16.mxu0 0
    %766 = vmatpush1.bf16.msra.mxu0 %v553
    %767 = vmatprep.subr.bf16.mxu0 0
    %768 = vmatpush1.bf16.msra.mxu0 %v554
    %769 = vmatprep.subr.bf16.mxu0 0
    %770 = vmatpush1.bf16.msra.mxu0 %v555
    %771 = vmatprep.subr.bf16.mxu0 0
    %772 = vmatpush1.bf16.msra.mxu0 %v556
    %773 = vmatprep.mubr.bf16.mxu0 %v82
    %774 = vmatmul.mubr.bf16.gmra.mrb[0].mxu0 %v81
    %v775 = vpop.f32.mrb[0].mxu0
    %v776 = vadd.f32 %v736, %v775
    %v777 = vpop.f32.mrb[0].mxu0
    %v778 = vpop.f32.mrb[0].mxu0
    %v779 = vpop.f32.mrb[0].mxu0
    %780 = vdwg.mxu0
    %v781 = vxor.u32 %v776, 2147483648
    %v782 = vmul.f32 %v781, 1.442695
    %v783 = vpow.pop %v782
    %v784 = vadd.f32 %v783, 1.0
    %v785 = vrcp.pop %v784
    %v786 = vmul.f32 1.0, %v785
    %v787 = vmul.f32 %v776, %v786
    %v788 = vpack.c.bf16 %v787, %v787
    %v790 = vlaneseq
    %v791 = vshrl.u32 %v790, 7
    %v792 = vsub.s32 0, %v791
    %v793 = vrot.slane %v228, %v792
    %v811 = vunpack.c.l.b16 %v212
    %v812 = vunpack.c.l.b16 %v213
    %v813 = vunpack.c.l.b16 %v214
    %v814 = vunpack.c.l.b16 %v215
    %v815 = vunpack.c.l.b16 %v216
    %v816 = vunpack.c.l.b16 %v217
    %v817 = vunpack.c.l.b16 %v218
    %v818 = vunpack.c.l.b16 %v219
    %v819 = vunpack.c.l.b16 %v220
    %v820 = vunpack.c.l.b16 %v221
    %v821 = vunpack.c.l.b16 %v222
    %v822 = vunpack.c.l.b16 %v223
    %v823 = vunpack.c.l.b16 %v224
    %v824 = vunpack.c.l.b16 %v225
    %v825 = vunpack.c.l.b16 %v226
    %v826 = vunpack.c.l.b16 %v227
    %v827 = vpack.c.b16 %v812, %v811
    %v828 = vpack.c.b16 %v814, %v813
    %v829 = vpack.c.b16 %v816, %v815
    %v830 = vpack.c.b16 %v818, %v817
    %v831 = vpack.c.b16 %v820, %v819
    %v832 = vpack.c.b16 %v822, %v821
    %v833 = vpack.c.b16 %v824, %v823
    %v834 = vpack.c.b16 %v826, %v825
    %843 = vmatprep.subr.bf16.mxu0 0
    %844 = vmatpush1.bf16.msra.mxu0 %v827
    %845 = vmatprep.subr.bf16.mxu0 0
    %846 = vmatpush1.bf16.msra.mxu0 %v828
    %847 = vmatprep.subr.bf16.mxu0 0
    %848 = vmatpush1.bf16.msra.mxu0 %v829
    %849 = vmatprep.subr.bf16.mxu0 0
    %850 = vmatpush1.bf16.msra.mxu0 %v830
    %851 = vmatprep.subr.bf16.mxu0 0
    %852 = vmatpush1.bf16.msra.mxu0 %v831
    %853 = vmatprep.subr.bf16.mxu0 0
    %854 = vmatpush1.bf16.msra.mxu0 %v832
    %855 = vmatprep.subr.bf16.mxu0 0
    %856 = vmatpush1.bf16.msra.mxu0 %v833
    %857 = vmatprep.subr.bf16.mxu0 0
    %858 = vmatpush1.bf16.msra.mxu0 %v834
    %859 = vmatprep.subr.bf16.mxu0 0
    %860 = vmatpush1.bf16.msra.mxu0 0
    %861 = vmatprep.subr.bf16.mxu0 0
    %862 = vmatpush1.bf16.msra.mxu0 0
    %863 = vmatprep.subr.bf16.mxu0 0
    %864 = vmatpush1.bf16.msra.mxu0 0
    %865 = vmatprep.subr.bf16.mxu0 0
    %866 = vmatpush1.bf16.msra.mxu0 0
    %867 = vmatprep.subr.bf16.mxu0 0
    %868 = vmatpush1.bf16.msra.mxu0 0
    %869 = vmatprep.subr.bf16.mxu0 0
    %870 = vmatpush1.bf16.msra.mxu0 0
    %871 = vmatprep.subr.bf16.mxu0 0
    %872 = vmatpush1.bf16.msra.mxu0 0
    %873 = vmatprep.subr.bf16.mxu0 0
    %874 = vmatpush1.bf16.msra.mxu0 0
    %875 = vmatprep.mubr.bf16.mxu0 0
    %876 = vmatmul.mubr.bf16.gmra.mrb[0].mxu0 %v788
    %v877 = vpop.f32.mrb[0].mxu0
    %v878 = vadd.f32 %v793, %v877
    %v879 = vpop.f32.mrb[0].mxu0
    %v880 = vpop.f32.mrb[0].mxu0
    %v881 = vpop.f32.mrb[0].mxu0
    %882 = vdwg.mxu0
    %884 = vset.pattern.permute.xlu0 0
    %885 = vperm.xlu0 %884, %v230
    %v886 = vpop.permute.xlu0 %885
    %v889 = vlaneseq
    %v890 = vshrl.u32 %v889, 7
    %v891 = vsub.s32 0, %v890
    %v892 = vrot.slane %v229, %v891
    %v894 = vmul.f32 %v886, %v892
    %v895 = vsub.f32 1.0, %v230
    %897 = vset.pattern.permute.xlu0 0
    %898 = vperm.xlu0 %897, %v895
    %v899 = vpop.permute.xlu0 %898
    %v901 = vmul.f32 %v899, %v878
    %v902 = vadd.f32 %v894, %v901
    %903 = vst [vmem:[#allocation8] sm:$0xff] %v902
    // Predicated region
    $region42: #{tpu_custom_call.1} parent=1 // pred_check
      _
    $region43: #{tpu_custom_call.1} parent=1 // pred_check_branch
      %905 = sbr.rel (0) target = $region45
    $region44: #{tpu_custom_call.1} parent=1 // pred_region
      %s907 = ssub.s32 128, 128
      %908 = vsyncadd [#allocation4], %s907
      %s910 = sshll.u32 [#allocation8], 4
      %s911 = int_to_ptr.vmem [resolvable:$true] %s910
      %913 = dma.vmem_to_hbm [thread:$0]  %s911, 128, %s7, [#allocation4]
    $region45: #{tpu_custom_call.1} parent=1 // pred_fallthru
      _
    // Predicated region
    $region46: #{tpu_custom_call.1} parent=1 // pred_check
      _
    $region47: #{tpu_custom_call.1} parent=1 // pred_check_branch
      %915 = sbr.rel (0) target = $region49
    $region48: #{tpu_custom_call.1} parent=1 // pred_region
      %916 = dma.done [#allocation4], 128
    $region49: #{tpu_custom_call.1} parent=1 // pred_fallthru
      _
    %917 = vsyncpa [#allocation3], 1
    %918 = vsyncpa [#allocation6], 1
    %919 = vsyncpa [#allocation4], 1

</llo_original>
